<compile_context>
chip_gen: v6e
topology: v6e:2x2x1
jax: 0.10.0
libtpu: 0.0.40
codegen_flags: <defaults>
</compile_context>

<pallas_src>
import functools

import jax
import jax.numpy as jnp
from jax.experimental import pallas as pl
from jax.experimental.pallas import tpu as pltpu

IN_FEATURES = 10        # ContPolicyNet no_of_inputs
OUT_FEATURES = 5        # ContPolicyNet no_of_outputs
HIDDEN = 256            # ContPolicyNet no_of_hidden_units
IN_PAD = 128            # zero-padded input feature width  (lane aligned)
OUT_PAD = 128           # zero-padded output head width    (lane-dense stores)
DEFAULT_TILE_B = 256    # batch tile: matches v6e/v7x 256-wide MXU (128 ok on v5e)


def _policy_mlp_kernel(x_ref,
                       w1_ref, b1_ref,
                       w2_ref, b2_ref,
                       w3_ref, b3_ref,
                       w4_ref, b4_ref,
                       o_ref):
    # Layer 1: Linear(in_pad -> hidden) + ReLU   (zero-padded K is inert)
    h = jnp.dot(x_ref[...], w1_ref[...], preferred_element_type=jnp.float32)
    h = jnp.maximum(h + b1_ref[...], 0.0)
    # Layer 2: Linear(hidden -> hidden) + ReLU
    h = jnp.dot(h, w2_ref[...], preferred_element_type=jnp.float32)
    h = jnp.maximum(h + b2_ref[...], 0.0)
    # Layer 3: Linear(hidden -> hidden) + ReLU
    h = jnp.dot(h, w3_ref[...], preferred_element_type=jnp.float32)
    h = jnp.maximum(h + b3_ref[...], 0.0)
    # Layer 4: Linear(hidden -> out_pad) + Tanh  (padded columns sliced away outside)
    y = jnp.dot(h, w4_ref[...], preferred_element_type=jnp.float32)
    o_ref[...] = jnp.tanh(y + b4_ref[...]).astype(o_ref.dtype)


def _pad_axis(arr, axis, size):
    pad = size - arr.shape[axis]
    if pad <= 0:
        return arr
    widths = [(0, 0)] * arr.ndim
    widths[axis] = (0, pad)
    return jnp.pad(arr, widths)


def _round_up(n, m):
    return ((n + m - 1) // m) * m


def _cost_estimate(padded_batch):
    flops = 2 * padded_batch * (IN_PAD * HIDDEN
                                + HIDDEN * HIDDEN * 2
                                + HIDDEN * OUT_PAD)
    param_bytes = 4 * (IN_PAD * HIDDEN + 2 * HIDDEN * HIDDEN + HIDDEN * OUT_PAD
                       + 3 * HIDDEN + OUT_PAD)
    io_bytes = 4 * padded_batch * (IN_PAD + OUT_PAD)
    return pl.CostEstimate(flops=flops,
                           transcendentals=padded_batch * OUT_PAD,
                           bytes_accessed=param_bytes + io_bytes)


@functools.partial(jax.jit, static_argnames=("tile_b",))
def cont_policy_net_forward(x, params, tile_b=DEFAULT_TILE_B):
    """ContPolicyNet forward as a single fused Pallas kernel.

    x:      [batch, IN_FEATURES] float32
    params: dict w1..w4 stored as [in, out], b1..b4 as [1, out]
    returns [batch, OUT_FEATURES] float32
    """
    batch = x.shape[0]

    # Lane-align all operands (zero padding is mathematically inert here).
    x_p = _pad_axis(x.astype(jnp.float32), 1, IN_PAD)
    w1 = _pad_axis(params["w1"], 0, IN_PAD)          # [IN_PAD, HIDDEN]
    b1, w2, b2, w3, b3 = (params["b1"], params["w2"], params["b2"],
                          params["w3"], params["b3"])
    w4 = _pad_axis(params["w4"], 1, OUT_PAD)         # [HIDDEN, OUT_PAD]
    b4 = _pad_axis(params["b4"], 1, OUT_PAD)         # [1, OUT_PAD]
    args = (w1, b1, w2, b2, w3, b3, w4, b4)

    if batch <= tile_b:
        # Small / latency-bound batch: one fused block, no grid, no pipelining
        # overhead.  Pad batch to a sublane multiple of 8.
        pb = max(8, _round_up(batch, 8))
        x_p = _pad_axis(x_p, 0, pb)
        out = pl.pallas_call(
            _policy_mlp_kernel,
            out_shape=jax.ShapeDtypeStruct((pb, OUT_PAD), jnp.float32),
            in_specs=[pl.BlockSpec(memory_space=pltpu.VMEM)] * 9,
            out_specs=pl.BlockSpec(memory_space=pltpu.VMEM),
            cost_estimate=_cost_estimate(pb),
        )(x_p, *args)
    else:
        # Large batch: tile batch so Pallas double-buffers the activation DMA
        # behind the matmuls; weights stay VMEM-resident (constant index map).
        pb = _round_up(batch, tile_b)
        x_p = _pad_axis(x_p, 0, pb)
        grid = (pb // tile_b,)
        const = lambda i: (0, 0)
        in_specs = [
            pl.BlockSpec((tile_b, IN_PAD), lambda i: (i, 0)),   # x tile
            pl.BlockSpec((IN_PAD, HIDDEN), const),              # w1
            pl.BlockSpec((1, HIDDEN), const),                   # b1
            pl.BlockSpec((HIDDEN, HIDDEN), const),              # w2
            pl.BlockSpec((1, HIDDEN), const),                   # b2
            pl.BlockSpec((HIDDEN, HIDDEN), const),              # w3
            pl.BlockSpec((1, HIDDEN), const),                   # b3
            pl.BlockSpec((HIDDEN, OUT_PAD), const),             # w4
            pl.BlockSpec((1, OUT_PAD), const),                  # b4
        ]
        out = pl.pallas_call(
            _policy_mlp_kernel,
            out_shape=jax.ShapeDtypeStruct((pb, OUT_PAD), jnp.float32),
            grid=grid,
            in_specs=in_specs,
            out_specs=pl.BlockSpec((tile_b, OUT_PAD), lambda i: (i, 0)),
            compiler_params=pltpu.CompilerParams(
                dimension_semantics=("parallel",)),  # v7x dual-TC sharding
            cost_estimate=_cost_estimate(pb),
        )(x_p, *args)

    return out[:batch, :OUT_FEATURES]


def init_params(key):
    """Synthetic parameters matching ContPolicyNet's shapes (torch Linear init)."""
    ks = jax.random.split(key, 8)

    def lin(kw, kb, fan_in, fan_out):
        bound = 1.0 / jnp.sqrt(jnp.float32(fan_in))
        w = jax.random.uniform(kw, (fan_in, fan_out), jnp.float32, -bound, bound)
        b = jax.random.uniform(kb, (1, fan_out), jnp.float32, -bound, bound)
        return w, b

    w1, b1 = lin(ks[0], ks[1], IN_FEATURES, HIDDEN)
    w2, b2 = lin(ks[2], ks[3], HIDDEN, HIDDEN)
    w3, b3 = lin(ks[4], ks[5], HIDDEN, HIDDEN)
    w4, b4 = lin(ks[6], ks[7], HIDDEN, OUT_FEATURES)
    return dict(w1=w1, b1=b1, w2=w2, b2=b2, w3=w3, b3=b3, w4=w4, b4=b4)


def reference_forward(x, p):
    h = jnp.maximum(x @ p["w1"] + p["b1"], 0.0)
    h = jnp.maximum(h @ p["w2"] + p["b2"], 0.0)
    h = jnp.maximum(h @ p["w3"] + p["b3"], 0.0)
    return jnp.tanh(h @ p["w4"] + p["b4"])


if __name__ == "__main__":
    key = jax.random.PRNGKey(0)
    k_param, k_x1, k_x2 = jax.random.split(key, 3)
    params = init_params(k_param)

    # Small-batch path (no grid, fully fused in VMEM).
    x_small = jax.random.normal(k_x1, (8, IN_FEATURES), jnp.float32)
    y_small = jax.block_until_ready(cont_policy_net_forward(x_small, params))
    assert y_small.shape == (8, OUT_FEATURES)
    assert jnp.allclose(y_small, reference_forward(x_small, params),
                        atol=1e-5, rtol=1e-5)

    # Tiled-batch path (grid over batch, weights VMEM-resident).
    x_big = jax.random.normal(k_x2, (512, IN_FEATURES), jnp.float32)
    y_big = jax.block_until_ready(cont_policy_net_forward(x_big, params))
    assert y_big.shape == (512, OUT_FEATURES)
    assert jnp.allclose(y_big, reference_forward(x_big, params),
                        atol=1e-5, rtol=1e-5)

    print("KERNEL_OK")
</pallas_src>

<mosaic_0001>
module attributes {stable_mosaic.version = 11 : i64} {
  func.func @_policy_mlp_kernel(%arg0: memref<8x128xf32, #tpu.memory_space<vmem>>, %arg1: memref<128x256xf32, #tpu.memory_space<vmem>>, %arg2: memref<1x256xf32, #tpu.memory_space<vmem>>, %arg3: memref<256x256xf32, #tpu.memory_space<vmem>>, %arg4: memref<1x256xf32, #tpu.memory_space<vmem>>, %arg5: memref<256x256xf32, #tpu.memory_space<vmem>>, %arg6: memref<1x256xf32, #tpu.memory_space<vmem>>, %arg7: memref<256x128xf32, #tpu.memory_space<vmem>>, %arg8: memref<1x128xf32, #tpu.memory_space<vmem>>, %arg9: memref<8x128xf32, #tpu.memory_space<vmem>>) attributes {dimension_semantics = [], scalar_prefetch = 0 : i64, scratch_operands = 0 : i64, tpu.core_type = #tpu.core_type<tc>} {
    %c0 = arith.constant 0 : index
    %c0_0 = arith.constant 0 : index
    %0 = vector.load %arg0[%c0, %c0_0] : memref<8x128xf32, #tpu.memory_space<vmem>>, vector<8x128xf32>
    %c0_1 = arith.constant 0 : index
    %c0_2 = arith.constant 0 : index
    %1 = vector.load %arg1[%c0_1, %c0_2] : memref<128x256xf32, #tpu.memory_space<vmem>>, vector<128x256xf32>
    %cst = arith.constant dense<0.000000e+00> : vector<8x256xf32>
    %2 = tpu.matmul %0, %1, %cst {dimension_numbers = #tpu.dot_dimension_numbers<[1], [0], [0], [1], [0, 0, 1, 1], [], []>} : vector<8x128xf32>, vector<128x256xf32>, vector<8x256xf32> -> vector<8x256xf32>
    %c0_3 = arith.constant 0 : index
    %c0_4 = arith.constant 0 : index
    %3 = vector.load %arg2[%c0_3, %c0_4] : memref<1x256xf32, #tpu.memory_space<vmem>>, vector<1x256xf32>
    %4 = vector.broadcast %3 : vector<1x256xf32> to vector<8x256xf32>
    %5 = arith.addf %2, %4 : vector<8x256xf32>
    %cst_5 = arith.constant 0.000000e+00 : f32
    %6 = vector.broadcast %cst_5 : f32 to vector<8x256xf32>
    %7 = arith.maximumf %5, %6 : vector<8x256xf32>
    %c0_6 = arith.constant 0 : index
    %c0_7 = arith.constant 0 : index
    %8 = vector.load %arg3[%c0_6, %c0_7] : memref<256x256xf32, #tpu.memory_space<vmem>>, vector<256x256xf32>
    %cst_8 = arith.constant dense<0.000000e+00> : vector<8x256xf32>
    %9 = tpu.matmul %7, %8, %cst_8 {dimension_numbers = #tpu.dot_dimension_numbers<[1], [0], [0], [1], [0, 0, 1, 1], [], []>} : vector<8x256xf32>, vector<256x256xf32>, vector<8x256xf32> -> vector<8x256xf32>
    %c0_9 = arith.constant 0 : index
    %c0_10 = arith.constant 0 : index
    %10 = vector.load %arg4[%c0_9, %c0_10] : memref<1x256xf32, #tpu.memory_space<vmem>>, vector<1x256xf32>
    %11 = vector.broadcast %10 : vector<1x256xf32> to vector<8x256xf32>
    %12 = arith.addf %9, %11 : vector<8x256xf32>
    %cst_11 = arith.constant 0.000000e+00 : f32
    %13 = vector.broadcast %cst_11 : f32 to vector<8x256xf32>
    %14 = arith.maximumf %12, %13 : vector<8x256xf32>
    %c0_12 = arith.constant 0 : index
    %c0_13 = arith.constant 0 : index
    %15 = vector.load %arg5[%c0_12, %c0_13] : memref<256x256xf32, #tpu.memory_space<vmem>>, vector<256x256xf32>
    %cst_14 = arith.constant dense<0.000000e+00> : vector<8x256xf32>
    %16 = tpu.matmul %14, %15, %cst_14 {dimension_numbers = #tpu.dot_dimension_numbers<[1], [0], [0], [1], [0, 0, 1, 1], [], []>} : vector<8x256xf32>, vector<256x256xf32>, vector<8x256xf32> -> vector<8x256xf32>
    %c0_15 = arith.constant 0 : index
    %c0_16 = arith.constant 0 : index
    %17 = vector.load %arg6[%c0_15, %c0_16] : memref<1x256xf32, #tpu.memory_space<vmem>>, vector<1x256xf32>
    %18 = vector.broadcast %17 : vector<1x256xf32> to vector<8x256xf32>
    %19 = arith.addf %16, %18 : vector<8x256xf32>
    %cst_17 = arith.constant 0.000000e+00 : f32
    %20 = vector.broadcast %cst_17 : f32 to vector<8x256xf32>
    %21 = arith.maximumf %19, %20 : vector<8x256xf32>
    %c0_18 = arith.constant 0 : index
    %c0_19 = arith.constant 0 : index
    %22 = vector.load %arg7[%c0_18, %c0_19] : memref<256x128xf32, #tpu.memory_space<vmem>>, vector<256x128xf32>
    %cst_20 = arith.constant dense<0.000000e+00> : vector<8x128xf32>
    %23 = tpu.matmul %21, %22, %cst_20 {dimension_numbers = #tpu.dot_dimension_numbers<[1], [0], [0], [1], [0, 0, 1, 1], [], []>} : vector<8x256xf32>, vector<256x128xf32>, vector<8x128xf32> -> vector<8x128xf32>
    %c0_21 = arith.constant 0 : index
    %c0_22 = arith.constant 0 : index
    %24 = vector.load %arg8[%c0_21, %c0_22] : memref<1x128xf32, #tpu.memory_space<vmem>>, vector<1x128xf32>
    %25 = vector.broadcast %24 : vector<1x128xf32> to vector<8x128xf32>
    %26 = arith.addf %23, %25 : vector<8x128xf32>
    %27 = math.tanh %26 : vector<8x128xf32>
    %c0_23 = arith.constant 0 : index
    %c0_24 = arith.constant 0 : index
    %28 = vector.load %arg9[%c0_23, %c0_24] : memref<8x128xf32, #tpu.memory_space<vmem>>, vector<8x128xf32>
    tpu.vector_store %arg9[%c0_23, %c0_24], %27 {strides = array<i32>} : memref<8x128xf32, #tpu.memory_space<vmem>>, vector<8x128xf32>,
    return
  }
}

</mosaic_0001>

<llo_original>
// kernel: cont_policy_net_forward.1
$region0: #{cont_policy_net_forward.1}
  #allocation0 [shape = 'u32[]', space=smem, size = 0x4, offset = 0x4, fixed_abs, tag = 'smem constant byte address 0x4 - core index']
  #allocation1 [shape = 'u32[144,128]{1,0:T(1,128)}', space=vmem, size = 0x12000, scoped, tag = 'internal scratch']
  %s0 = inlined_call_operand.vmem [shape: f32[8,128], index: 0, kind: input, shape index: {}]
  %s1 = inlined_call_operand.vmem [shape: f32[128,256], index: 1, kind: input, shape index: {}]
  %s2 = inlined_call_operand.vmem [shape: f32[1,256], index: 2, kind: input, shape index: {}]
  %s3 = inlined_call_operand.vmem [shape: f32[256,256], index: 3, kind: input, shape index: {}]
  %s4 = inlined_call_operand.vmem [shape: f32[1,256], index: 4, kind: input, shape index: {}]
  %s5 = inlined_call_operand.vmem [shape: f32[256,256], index: 5, kind: input, shape index: {}]
  %s6 = inlined_call_operand.vmem [shape: f32[1,256], index: 6, kind: input, shape index: {}]
  %s7 = inlined_call_operand.vmem [shape: f32[256,128], index: 7, kind: input, shape index: {}]
  %s8 = inlined_call_operand.vmem [shape: f32[1,128], index: 8, kind: input, shape index: {}]
  %s9 = inlined_call_operand.hbm [shape: f32[8,128], index: 9, kind: output, shape index: {}]
  %s10 = sld [smem:[#allocation0]]
  $region46: #{cont_policy_net_forward.1} parent=0
    _
  %s12 = ssub.s32 1, %s10
  %s13 = scalar_select 0, %s12, %s10
  $region1: #{cont_policy_net_forward.1} parent=0
    #allocation2 [shape = 'u8[4096]{0}', space=vmem, size = 0x1000, scoped, tag = 'output window, operand 0, single buffered']
    #allocation3 [shape = 's32[1]{0}', space=sflag, size = 0x4, scoped, tag = 'scoped memory for cont_policy_net_forward.1']
    %14 = vsyncpa [#allocation3], 0
    // Predicated region
    $region2: #{cont_policy_net_forward.1} parent=1 // pred_check
      _
    $region3: #{cont_policy_net_forward.1} parent=1 // pred_check_branch
      %16 = sbr.rel (0) target = $region5
    $region4: #{cont_policy_net_forward.1} parent=1 // pred_region
      _
    $region5: #{cont_policy_net_forward.1} parent=1 // pred_fallthru
      _
    // Predicated region
    $region6: #{cont_policy_net_forward.1} parent=1 // pred_check
      _
    $region7: #{cont_policy_net_forward.1} parent=1 // pred_check_branch
      %18 = sbr.rel (0) target = $region9
    $region8: #{cont_policy_net_forward.1} parent=1 // pred_region
      _
    $region9: #{cont_policy_net_forward.1} parent=1 // pred_fallthru
      _
    // Predicated region
    $region10: #{cont_policy_net_forward.1} parent=1 // pred_check
      _
    $region11: #{cont_policy_net_forward.1} parent=1 // pred_check_branch
      %20 = sbr.rel (0) target = $region13
    $region12: #{cont_policy_net_forward.1} parent=1 // pred_region
      _
    $region13: #{cont_policy_net_forward.1} parent=1 // pred_fallthru
      _
    // Predicated region
    $region14: #{cont_policy_net_forward.1} parent=1 // pred_check
      _
    $region15: #{cont_policy_net_forward.1} parent=1 // pred_check_branch
      %22 = sbr.rel (0) target = $region17
    $region16: #{cont_policy_net_forward.1} parent=1 // pred_region
      _
    $region17: #{cont_policy_net_forward.1} parent=1 // pred_fallthru
      _
    // Predicated region
    $region18: #{cont_policy_net_forward.1} parent=1 // pred_check
      _
    $region19: #{cont_policy_net_forward.1} parent=1 // pred_check_branch
      %24 = sbr.rel (0) target = $region21
    $region20: #{cont_policy_net_forward.1} parent=1 // pred_region
      _
    $region21: #{cont_policy_net_forward.1} parent=1 // pred_fallthru
      _
    // Predicated region
    $region22: #{cont_policy_net_forward.1} parent=1 // pred_check
      _
    $region23: #{cont_policy_net_forward.1} parent=1 // pred_check_branch
      %26 = sbr.rel (0) target = $region25
    $region24: #{cont_policy_net_forward.1} parent=1 // pred_region
      _
    $region25: #{cont_policy_net_forward.1} parent=1 // pred_fallthru
      _
    // Predicated region
    $region26: #{cont_policy_net_forward.1} parent=1 // pred_check
      _
    $region27: #{cont_policy_net_forward.1} parent=1 // pred_check_branch
      %28 = sbr.rel (0) target = $region29
    $region28: #{cont_policy_net_forward.1} parent=1 // pred_region
      _
    $region29: #{cont_policy_net_forward.1} parent=1 // pred_fallthru
      _
    // Predicated region
    $region30: #{cont_policy_net_forward.1} parent=1 // pred_check
      _
    $region31: #{cont_policy_net_forward.1} parent=1 // pred_check_branch
      %30 = sbr.rel (0) target = $region33
    $region32: #{cont_policy_net_forward.1} parent=1 // pred_region
      _
    $region33: #{cont_policy_net_forward.1} parent=1 // pred_fallthru
      _
    // Predicated region
    $region34: #{cont_policy_net_forward.1} parent=1 // pred_check
      _
    $region35: #{cont_policy_net_forward.1} parent=1 // pred_check_branch
      %32 = sbr.rel (0) target = $region37
    $region36: #{cont_policy_net_forward.1} parent=1 // pred_region
      _
    $region37: #{cont_policy_net_forward.1} parent=1 // pred_fallthru
      _
    %v33 = vld [vmem:[%s0] sm:$0xff]
    %v34 = vld [vmem:[%s1] sm:$0xff]
    %v35 = vld [vmem:[%s1 + $0x8] sm:$0xff]
    %v36 = vld [vmem:[%s1 + $0x10] sm:$0xff]
    %v37 = vld [vmem:[%s1 + $0x18] sm:$0xff]
    %v38 = vld [vmem:[%s1 + $0x20] sm:$0xff]
    %v39 = vld [vmem:[%s1 + $0x28] sm:$0xff]
    %v40 = vld [vmem:[%s1 + $0x30] sm:$0xff]
    %v41 = vld [vmem:[%s1 + $0x38] sm:$0xff]
    %v42 = vld [vmem:[%s1 + $0x40] sm:$0xff]
    %v43 = vld [vmem:[%s1 + $0x48] sm:$0xff]
    %v44 = vld [vmem:[%s1 + $0x50] sm:$0xff]
    %v45 = vld [vmem:[%s1 + $0x58] sm:$0xff]
    %v46 = vld [vmem:[%s1 + $0x60] sm:$0xff]
    %v47 = vld [vmem:[%s1 + $0x68] sm:$0xff]
    %v48 = vld [vmem:[%s1 + $0x70] sm:$0xff]
    %v49 = vld [vmem:[%s1 + $0x78] sm:$0xff]
    %v50 = vld [vmem:[%s1 + $0x80] sm:$0xff]
    %v51 = vld [vmem:[%s1 + $0x88] sm:$0xff]
    %v52 = vld [vmem:[%s1 + $0x90] sm:$0xff]
    %v53 = vld [vmem:[%s1 + $0x98] sm:$0xff]
    %v54 = vld [vmem:[%s1 + $0xa0] sm:$0xff]
    %v55 = vld [vmem:[%s1 + $0xa8] sm:$0xff]
    %v56 = vld [vmem:[%s1 + $0xb0] sm:$0xff]
    %v57 = vld [vmem:[%s1 + $0xb8] sm:$0xff]
    %v58 = vld [vmem:[%s1 + $0xc0] sm:$0xff]
    %v59 = vld [vmem:[%s1 + $0xc8] sm:$0xff]
    %v60 = vld [vmem:[%s1 + $0xd0] sm:$0xff]
    %v61 = vld [vmem:[%s1 + $0xd8] sm:$0xff]
    %v62 = vld [vmem:[%s1 + $0xe0] sm:$0xff]
    %v63 = vld [vmem:[%s1 + $0xe8] sm:$0xff]
    %v64 = vld [vmem:[%s1 + $0xf0] sm:$0xff]
    %v65 = vld [vmem:[%s1 + $0xf8] sm:$0xff]
    %v66 = vld [vmem:[%s2] sm:$0x3]
    %v68 = vlaneseq
    %v69 = vshrl.u32 %v68, 7
    %v70 = vsub.s32 0, %v69
    %v71 = vrot.slane %v66, %v70
    %v72 = vlaneseq
    %v73 = vshrl.u32 %v72, 7
    %v74 = vsub.s32 1, %v73
    %v75 = vrot.slane %v66, %v74
    %78 = vmatprep.subr.mxu0 %v65
    %79 = vmatpush1.msra.mxu0 %v64
    %80 = vmatprep.subr.mxu0 %v63
    %81 = vmatpush1.msra.mxu0 %v62
    %82 = vmatprep.subr.mxu0 %v61
    %83 = vmatpush1.msra.mxu0 %v60
    %84 = vmatprep.subr.mxu0 %v59
    %85 = vmatpush1.msra.mxu0 %v58
    %86 = vmatprep.subr.mxu0 %v57
    %87 = vmatpush1.msra.mxu0 %v56
    %88 = vmatprep.subr.mxu0 %v55
    %89 = vmatpush1.msra.mxu0 %v54
    %90 = vmatprep.subr.mxu0 %v53
    %91 = vmatpush1.msra.mxu0 %v52
    %92 = vmatprep.subr.mxu0 %v51
    %93 = vmatpush1.msra.mxu0 %v50
    %94 = vmatprep.subr.mxu0 %v49
    %95 = vmatpush1.msra.mxu0 %v48
    %96 = vmatprep.subr.mxu0 %v47
    %97 = vmatpush1.msra.mxu0 %v46
    %98 = vmatprep.subr.mxu0 %v45
    %99 = vmatpush1.msra.mxu0 %v44
    %100 = vmatprep.subr.mxu0 %v43
    %101 = vmatpush1.msra.mxu0 %v42
    %102 = vmatprep.subr.mxu0 %v41
    %103 = vmatpush1.msra.mxu0 %v40
    %104 = vmatprep.subr.mxu0 %v39
    %105 = vmatpush1.msra.mxu0 %v38
    %106 = vmatprep.subr.mxu0 %v37
    %107 = vmatpush1.msra.mxu0 %v36
    %108 = vmatprep.subr.mxu0 %v35
    %109 = vmatpush1.msra.mxu0 %v34
    %110 = vmatprep.subr.mxu0 0.0
    %111 = vmatpush2.msra.mxu0 0.0
    %112 = vmatprep.subr.mxu0 0.0
    %113 = vmatpush2.msra.mxu0 0.0
    %114 = vmatprep.subr.mxu0 0.0
    %115 = vmatpush2.msra.mxu0 0.0
    %116 = vmatprep.subr.mxu0 0.0
    %117 = vmatpush2.msra.mxu0 0.0
    %118 = vmatprep.subr.mxu0 0.0
    %119 = vmatpush2.msra.mxu0 0.0
    %120 = vmatprep.subr.mxu0 0.0
    %121 = vmatpush2.msra.mxu0 0.0
    %122 = vmatprep.subr.mxu0 0.0
    %123 = vmatpush2.msra.mxu0 0.0
    %124 = vmatprep.subr.mxu0 0.0
    %125 = vmatpush2.msra.mxu0 0.0
    %126 = vmatprep.subr.mxu0 0.0
    %127 = vmatpush2.msra.mxu0 0.0
    %128 = vmatprep.subr.mxu0 0.0
    %129 = vmatpush2.msra.mxu0 0.0
    %130 = vmatprep.subr.mxu0 0.0
    %131 = vmatpush2.msra.mxu0 0.0
    %132 = vmatprep.subr.mxu0 0.0
    %133 = vmatpush2.msra.mxu0 0.0
    %134 = vmatprep.subr.mxu0 0.0
    %135 = vmatpush2.msra.mxu0 0.0
    %136 = vmatprep.subr.mxu0 0.0
    %137 = vmatpush2.msra.mxu0 0.0
    %138 = vmatprep.subr.mxu0 0.0
    %139 = vmatpush2.msra.mxu0 0.0
    %140 = vmatprep.subr.mxu0 0.0
    %141 = vmatpush2.msra.mxu0 0.0
    %142 = vmatprep.mubr.f32.mxu0 0.0
    %143 = vmatmul.mubr.f32.gmra.mxu0 %v33
    %v144 = vpop.f32.mrf.mxu0
    %v145 = vadd.f32 %v71, %v144
    %v146 = vpop.f32.mrf.mxu0
    %v147 = vadd.f32 %v75, %v146
    %148 = vdwg.mxu0
    %v149 = vmax.f32 %v145, 0.0
    %v150 = vmax.f32 %v147, 0.0
    %v151 = vld [vmem:[%s3] sm:$0xff]
    %v152 = vld [vmem:[%s3 + $0x8] sm:$0xff]
    %v153 = vld [vmem:[%s3 + $0x10] sm:$0xff]
    %v154 = vld [vmem:[%s3 + $0x18] sm:$0xff]
    %v155 = vld [vmem:[%s3 + $0x20] sm:$0xff]
    %v156 = vld [vmem:[%s3 + $0x28] sm:$0xff]
    %v157 = vld [vmem:[%s3 + $0x30] sm:$0xff]
    %v158 = vld [vmem:[%s3 + $0x38] sm:$0xff]
    %v159 = vld [vmem:[%s3 + $0x40] sm:$0xff]
    %v160 = vld [vmem:[%s3 + $0x48] sm:$0xff]
    %v161 = vld [vmem:[%s3 + $0x50] sm:$0xff]
    %v162 = vld [vmem:[%s3 + $0x58] sm:$0xff]
    %v163 = vld [vmem:[%s3 + $0x60] sm:$0xff]
    %v164 = vld [vmem:[%s3 + $0x68] sm:$0xff]
    %v165 = vld [vmem:[%s3 + $0x70] sm:$0xff]
    %v166 = vld [vmem:[%s3 + $0x78] sm:$0xff]
    %v167 = vld [vmem:[%s3 + $0x80] sm:$0xff]
    %v168 = vld [vmem:[%s3 + $0x88] sm:$0xff]
    %v169 = vld [vmem:[%s3 + $0x90] sm:$0xff]
    %v170 = vld [vmem:[%s3 + $0x98] sm:$0xff]
    %v171 = vld [vmem:[%s3 + $0xa0] sm:$0xff]
    %v172 = vld [vmem:[%s3 + $0xa8] sm:$0xff]
    %v173 = vld [vmem:[%s3 + $0xb0] sm:$0xff]
    %v174 = vld [vmem:[%s3 + $0xb8] sm:$0xff]
    %v175 = vld [vmem:[%s3 + $0xc0] sm:$0xff]
    %v176 = vld [vmem:[%s3 + $0xc8] sm:$0xff]
    %v177 = vld [vmem:[%s3 + $0xd0] sm:$0xff]
    %v178 = vld [vmem:[%s3 + $0xd8] sm:$0xff]
    %v179 = vld [vmem:[%s3 + $0xe0] sm:$0xff]
    %v180 = vld [vmem:[%s3 + $0xe8] sm:$0xff]
    %v181 = vld [vmem:[%s3 + $0xf0] sm:$0xff]
    %v182 = vld [vmem:[%s3 + $0xf8] sm:$0xff]
    %v183 = vld [vmem:[%s3 + $0x100] sm:$0xff]
    %v184 = vld [vmem:[%s3 + $0x108] sm:$0xff]
    %v185 = vld [vmem:[%s3 + $0x110] sm:$0xff]
    %v186 = vld [vmem:[%s3 + $0x118] sm:$0xff]
    %v187 = vld [vmem:[%s3 + $0x120] sm:$0xff]
    %v188 = vld [vmem:[%s3 + $0x128] sm:$0xff]
    %v189 = vld [vmem:[%s3 + $0x130] sm:$0xff]
    %v190 = vld [vmem:[%s3 + $0x138] sm:$0xff]
    %v191 = vld [vmem:[%s3 + $0x140] sm:$0xff]
    %v192 = vld [vmem:[%s3 + $0x148] sm:$0xff]
    %v193 = vld [vmem:[%s3 + $0x150] sm:$0xff]
    %v194 = vld [vmem:[%s3 + $0x158] sm:$0xff]
    %v195 = vld [vmem:[%s3 + $0x160] sm:$0xff]
    %v196 = vld [vmem:[%s3 + $0x168] sm:$0xff]
    %v197 = vld [vmem:[%s3 + $0x170] sm:$0xff]
    %v198 = vld [vmem:[%s3 + $0x178] sm:$0xff]
    %v199 = vld [vmem:[%s3 + $0x180] sm:$0xff]
    %v200 = vld [vmem:[%s3 + $0x188] sm:$0xff]
    %v201 = vld [vmem:[%s3 + $0x190] sm:$0xff]
    %v202 = vld [vmem:[%s3 + $0x198] sm:$0xff]
    %v203 = vld [vmem:[%s3 + $0x1a0] sm:$0xff]
    %v204 = vld [vmem:[%s3 + $0x1a8] sm:$0xff]
    %v205 = vld [vmem:[%s3 + $0x1b0] sm:$0xff]
    %v206 = vld [vmem:[%s3 + $0x1b8] sm:$0xff]
    %v207 = vld [vmem:[%s3 + $0x1c0] sm:$0xff]
    %v208 = vld [vmem:[%s3 + $0x1c8] sm:$0xff]
    %v209 = vld [vmem:[%s3 + $0x1d0] sm:$0xff]
    %v210 = vld [vmem:[%s3 + $0x1d8] sm:$0xff]
    %v211 = vld [vmem:[%s3 + $0x1e0] sm:$0xff]
    %v212 = vld [vmem:[%s3 + $0x1e8] sm:$0xff]
    %v213 = vld [vmem:[%s3 + $0x1f0] sm:$0xff]
    %v214 = vld [vmem:[%s3 + $0x1f8] sm:$0xff]
    %v215 = vld [vmem:[%s4] sm:$0x3]
    %v217 = vlaneseq
    %v218 = vshrl.u32 %v217, 7
    %v219 = vsub.s32 0, %v218
    %v220 = vrot.slane %v215, %v219
    %v221 = vlaneseq
    %v222 = vshrl.u32 %v221, 7
    %v223 = vsub.s32 1, %v222
    %v224 = vrot.slane %v215, %v223
    %227 = vmatprep.subr.mxu0 %v182
    %228 = vmatpush1.msra.mxu0 %v181
    %229 = vmatprep.subr.mxu0 %v180
    %230 = vmatpush1.msra.mxu0 %v179
    %231 = vmatprep.subr.mxu0 %v178
    %232 = vmatpush1.msra.mxu0 %v177
    %233 = vmatprep.subr.mxu0 %v176
    %234 = vmatpush1.msra.mxu0 %v175
    %235 = vmatprep.subr.mxu0 %v174
    %236 = vmatpush1.msra.mxu0 %v173
    %237 = vmatprep.subr.mxu0 %v172
    %238 = vmatpush1.msra.mxu0 %v171
    %239 = vmatprep.subr.mxu0 %v170
    %240 = vmatpush1.msra.mxu0 %v169
    %241 = vmatprep.subr.mxu0 %v168
    %242 = vmatpush1.msra.mxu0 %v167
    %243 = vmatprep.subr.mxu0 %v166
    %244 = vmatpush1.msra.mxu0 %v165
    %245 = vmatprep.subr.mxu0 %v164
    %246 = vmatpush1.msra.mxu0 %v163
    %247 = vmatprep.subr.mxu0 %v162
    %248 = vmatpush1.msra.mxu0 %v161
    %249 = vmatprep.subr.mxu0 %v160
    %250 = vmatpush1.msra.mxu0 %v159
    %251 = vmatprep.subr.mxu0 %v158
    %252 = vmatpush1.msra.mxu0 %v157
    %253 = vmatprep.subr.mxu0 %v156
    %254 = vmatpush1.msra.mxu0 %v155
    %255 = vmatprep.subr.mxu0 %v154
    %256 = vmatpush1.msra.mxu0 %v153
    %257 = vmatprep.subr.mxu0 %v152
    %258 = vmatpush1.msra.mxu0 %v151
    %259 = vmatprep.subr.mxu0 %v214
    %260 = vmatpush2.msra.mxu0 %v213
    %261 = vmatprep.subr.mxu0 %v212
    %262 = vmatpush2.msra.mxu0 %v211
    %263 = vmatprep.subr.mxu0 %v210
    %264 = vmatpush2.msra.mxu0 %v209
    %265 = vmatprep.subr.mxu0 %v208
    %266 = vmatpush2.msra.mxu0 %v207
    %267 = vmatprep.subr.mxu0 %v206
    %268 = vmatpush2.msra.mxu0 %v205
    %269 = vmatprep.subr.mxu0 %v204
    %270 = vmatpush2.msra.mxu0 %v203
    %271 = vmatprep.subr.mxu0 %v202
    %272 = vmatpush2.msra.mxu0 %v201
    %273 = vmatprep.subr.mxu0 %v200
    %274 = vmatpush2.msra.mxu0 %v199
    %275 = vmatprep.subr.mxu0 %v198
    %276 = vmatpush2.msra.mxu0 %v197
    %277 = vmatprep.subr.mxu0 %v196
    %278 = vmatpush2.msra.mxu0 %v195
    %279 = vmatprep.subr.mxu0 %v194
    %280 = vmatpush2.msra.mxu0 %v193
    %281 = vmatprep.subr.mxu0 %v192
    %282 = vmatpush2.msra.mxu0 %v191
    %283 = vmatprep.subr.mxu0 %v190
    %284 = vmatpush2.msra.mxu0 %v189
    %285 = vmatprep.subr.mxu0 %v188
    %286 = vmatpush2.msra.mxu0 %v187
    %287 = vmatprep.subr.mxu0 %v186
    %288 = vmatpush2.msra.mxu0 %v185
    %289 = vmatprep.subr.mxu0 %v184
    %290 = vmatpush2.msra.mxu0 %v183
    %291 = vmatprep.mubr.f32.mxu0 %v150
    %292 = vmatmul.mubr.f32.gmra.mxu0 %v149
    %v293 = vpop.f32.mrf.mxu0
    %v294 = vadd.f32 %v220, %v293
    %v295 = vpop.f32.mrf.mxu0
    %v296 = vadd.f32 %v224, %v295
    %297 = vdwg.mxu0
    %v298 = vmax.f32 %v294, 0.0
    %v299 = vmax.f32 %v296, 0.0
    %v300 = vld [vmem:[%s5] sm:$0xff]
    %v301 = vld [vmem:[%s5 + $0x8] sm:$0xff]
    %v302 = vld [vmem:[%s5 + $0x10] sm:$0xff]
    %v303 = vld [vmem:[%s5 + $0x18] sm:$0xff]
    %v304 = vld [vmem:[%s5 + $0x20] sm:$0xff]
    %v305 = vld [vmem:[%s5 + $0x28] sm:$0xff]
    %v306 = vld [vmem:[%s5 + $0x30] sm:$0xff]
    %v307 = vld [vmem:[%s5 + $0x38] sm:$0xff]
    %v308 = vld [vmem:[%s5 + $0x40] sm:$0xff]
    %v309 = vld [vmem:[%s5 + $0x48] sm:$0xff]
    %v310 = vld [vmem:[%s5 + $0x50] sm:$0xff]
    %v311 = vld [vmem:[%s5 + $0x58] sm:$0xff]
    %v312 = vld [vmem:[%s5 + $0x60] sm:$0xff]
    %v313 = vld [vmem:[%s5 + $0x68] sm:$0xff]
    %v314 = vld [vmem:[%s5 + $0x70] sm:$0xff]
    %v315 = vld [vmem:[%s5 + $0x78] sm:$0xff]
    %v316 = vld [vmem:[%s5 + $0x80] sm:$0xff]
    %v317 = vld [vmem:[%s5 + $0x88] sm:$0xff]
    %v318 = vld [vmem:[%s5 + $0x90] sm:$0xff]
    %v319 = vld [vmem:[%s5 + $0x98] sm:$0xff]
    %v320 = vld [vmem:[%s5 + $0xa0] sm:$0xff]
    %v321 = vld [vmem:[%s5 + $0xa8] sm:$0xff]
    %v322 = vld [vmem:[%s5 + $0xb0] sm:$0xff]
    %v323 = vld [vmem:[%s5 + $0xb8] sm:$0xff]
    %v324 = vld [vmem:[%s5 + $0xc0] sm:$0xff]
    %v325 = vld [vmem:[%s5 + $0xc8] sm:$0xff]
    %v326 = vld [vmem:[%s5 + $0xd0] sm:$0xff]
    %v327 = vld [vmem:[%s5 + $0xd8] sm:$0xff]
    %v328 = vld [vmem:[%s5 + $0xe0] sm:$0xff]
    %v329 = vld [vmem:[%s5 + $0xe8] sm:$0xff]
    %v330 = vld [vmem:[%s5 + $0xf0] sm:$0xff]
    %v331 = vld [vmem:[%s5 + $0xf8] sm:$0xff]
    %v332 = vld [vmem:[%s5 + $0x100] sm:$0xff]
    %v333 = vld [vmem:[%s5 + $0x108] sm:$0xff]
    %v334 = vld [vmem:[%s5 + $0x110] sm:$0xff]
    %v335 = vld [vmem:[%s5 + $0x118] sm:$0xff]
    %v336 = vld [vmem:[%s5 + $0x120] sm:$0xff]
    %v337 = vld [vmem:[%s5 + $0x128] sm:$0xff]
    %v338 = vld [vmem:[%s5 + $0x130] sm:$0xff]
    %v339 = vld [vmem:[%s5 + $0x138] sm:$0xff]
    %v340 = vld [vmem:[%s5 + $0x140] sm:$0xff]
    %v341 = vld [vmem:[%s5 + $0x148] sm:$0xff]
    %v342 = vld [vmem:[%s5 + $0x150] sm:$0xff]
    %v343 = vld [vmem:[%s5 + $0x158] sm:$0xff]
    %v344 = vld [vmem:[%s5 + $0x160] sm:$0xff]
    %v345 = vld [vmem:[%s5 + $0x168] sm:$0xff]
    %v346 = vld [vmem:[%s5 + $0x170] sm:$0xff]
    %v347 = vld [vmem:[%s5 + $0x178] sm:$0xff]
    %v348 = vld [vmem:[%s5 + $0x180] sm:$0xff]
    %v349 = vld [vmem:[%s5 + $0x188] sm:$0xff]
    %v350 = vld [vmem:[%s5 + $0x190] sm:$0xff]
    %v351 = vld [vmem:[%s5 + $0x198] sm:$0xff]
    %v352 = vld [vmem:[%s5 + $0x1a0] sm:$0xff]
    %v353 = vld [vmem:[%s5 + $0x1a8] sm:$0xff]
    %v354 = vld [vmem:[%s5 + $0x1b0] sm:$0xff]
    %v355 = vld [vmem:[%s5 + $0x1b8] sm:$0xff]
    %v356 = vld [vmem:[%s5 + $0x1c0] sm:$0xff]
    %v357 = vld [vmem:[%s5 + $0x1c8] sm:$0xff]
    %v358 = vld [vmem:[%s5 + $0x1d0] sm:$0xff]
    %v359 = vld [vmem:[%s5 + $0x1d8] sm:$0xff]
    %v360 = vld [vmem:[%s5 + $0x1e0] sm:$0xff]
    %v361 = vld [vmem:[%s5 + $0x1e8] sm:$0xff]
    %v362 = vld [vmem:[%s5 + $0x1f0] sm:$0xff]
    %v363 = vld [vmem:[%s5 + $0x1f8] sm:$0xff]
    %v364 = vld [vmem:[%s6] sm:$0x3]
    %v366 = vlaneseq
    %v367 = vshrl.u32 %v366, 7
    %v368 = vsub.s32 0, %v367
    %v369 = vrot.slane %v364, %v368
    %v370 = vlaneseq
    %v371 = vshrl.u32 %v370, 7
    %v372 = vsub.s32 1, %v371
    %v373 = vrot.slane %v364, %v372
    %376 = vmatprep.subr.mxu0 %v331
    %377 = vmatpush1.msra.mxu0 %v330
    %378 = vmatprep.subr.mxu0 %v329
    %379 = vmatpush1.msra.mxu0 %v328
    %380 = vmatprep.subr.mxu0 %v327
    %381 = vmatpush1.msra.mxu0 %v326
    %382 = vmatprep.subr.mxu0 %v325
    %383 = vmatpush1.msra.mxu0 %v324
    %384 = vmatprep.subr.mxu0 %v323
    %385 = vmatpush1.msra.mxu0 %v322
    %386 = vmatprep.subr.mxu0 %v321
    %387 = vmatpush1.msra.mxu0 %v320
    %388 = vmatprep.subr.mxu0 %v319
    %389 = vmatpush1.msra.mxu0 %v318
    %390 = vmatprep.subr.mxu0 %v317
    %391 = vmatpush1.msra.mxu0 %v316
    %392 = vmatprep.subr.mxu0 %v315
    %393 = vmatpush1.msra.mxu0 %v314
    %394 = vmatprep.subr.mxu0 %v313
    %395 = vmatpush1.msra.mxu0 %v312
    %396 = vmatprep.subr.mxu0 %v311
    %397 = vmatpush1.msra.mxu0 %v310
    %398 = vmatprep.subr.mxu0 %v309
    %399 = vmatpush1.msra.mxu0 %v308
    %400 = vmatprep.subr.mxu0 %v307
    %401 = vmatpush1.msra.mxu0 %v306
    %402 = vmatprep.subr.mxu0 %v305
    %403 = vmatpush1.msra.mxu0 %v304
    %404 = vmatprep.subr.mxu0 %v303
    %405 = vmatpush1.msra.mxu0 %v302
    %406 = vmatprep.subr.mxu0 %v301
    %407 = vmatpush1.msra.mxu0 %v300
    %408 = vmatprep.subr.mxu0 %v363
    %409 = vmatpush2.msra.mxu0 %v362
    %410 = vmatprep.subr.mxu0 %v361
    %411 = vmatpush2.msra.mxu0 %v360
    %412 = vmatprep.subr.mxu0 %v359
    %413 = vmatpush2.msra.mxu0 %v358
    %414 = vmatprep.subr.mxu0 %v357
    %415 = vmatpush2.msra.mxu0 %v356
    %416 = vmatprep.subr.mxu0 %v355
    %417 = vmatpush2.msra.mxu0 %v354
    %418 = vmatprep.subr.mxu0 %v353
    %419 = vmatpush2.msra.mxu0 %v352
    %420 = vmatprep.subr.mxu0 %v351
    %421 = vmatpush2.msra.mxu0 %v350
    %422 = vmatprep.subr.mxu0 %v349
    %423 = vmatpush2.msra.mxu0 %v348
    %424 = vmatprep.subr.mxu0 %v347
    %425 = vmatpush2.msra.mxu0 %v346
    %426 = vmatprep.subr.mxu0 %v345
    %427 = vmatpush2.msra.mxu0 %v344
    %428 = vmatprep.subr.mxu0 %v343
    %429 = vmatpush2.msra.mxu0 %v342
    %430 = vmatprep.subr.mxu0 %v341
    %431 = vmatpush2.msra.mxu0 %v340
    %432 = vmatprep.subr.mxu0 %v339
    %433 = vmatpush2.msra.mxu0 %v338
    %434 = vmatprep.subr.mxu0 %v337
    %435 = vmatpush2.msra.mxu0 %v336
    %436 = vmatprep.subr.mxu0 %v335
    %437 = vmatpush2.msra.mxu0 %v334
    %438 = vmatprep.subr.mxu0 %v333
    %439 = vmatpush2.msra.mxu0 %v332
    %440 = vmatprep.mubr.f32.mxu0 %v299
    %441 = vmatmul.mubr.f32.gmra.mxu0 %v298
    %v442 = vpop.f32.mrf.mxu0
    %v443 = vadd.f32 %v369, %v442
    %v444 = vpop.f32.mrf.mxu0
    %v445 = vadd.f32 %v373, %v444
    %446 = vdwg.mxu0
    %v447 = vmax.f32 %v443, 0.0
    %v448 = vmax.f32 %v445, 0.0
    %v449 = vld [vmem:[%s7] sm:$0xff]
    %v450 = vld [vmem:[%s7 + $0x8] sm:$0xff]
    %v451 = vld [vmem:[%s7 + $0x10] sm:$0xff]
    %v452 = vld [vmem:[%s7 + $0x18] sm:$0xff]
    %v453 = vld [vmem:[%s7 + $0x20] sm:$0xff]
    %v454 = vld [vmem:[%s7 + $0x28] sm:$0xff]
    %v455 = vld [vmem:[%s7 + $0x30] sm:$0xff]
    %v456 = vld [vmem:[%s7 + $0x38] sm:$0xff]
    %v457 = vld [vmem:[%s7 + $0x40] sm:$0xff]
    %v458 = vld [vmem:[%s7 + $0x48] sm:$0xff]
    %v459 = vld [vmem:[%s7 + $0x50] sm:$0xff]
    %v460 = vld [vmem:[%s7 + $0x58] sm:$0xff]
    %v461 = vld [vmem:[%s7 + $0x60] sm:$0xff]
    %v462 = vld [vmem:[%s7 + $0x68] sm:$0xff]
    %v463 = vld [vmem:[%s7 + $0x70] sm:$0xff]
    %v464 = vld [vmem:[%s7 + $0x78] sm:$0xff]
    %v465 = vld [vmem:[%s7 + $0x80] sm:$0xff]
    %v466 = vld [vmem:[%s7 + $0x88] sm:$0xff]
    %v467 = vld [vmem:[%s7 + $0x90] sm:$0xff]
    %v468 = vld [vmem:[%s7 + $0x98] sm:$0xff]
    %v469 = vld [vmem:[%s7 + $0xa0] sm:$0xff]
    %v470 = vld [vmem:[%s7 + $0xa8] sm:$0xff]
    %v471 = vld [vmem:[%s7 + $0xb0] sm:$0xff]
    %v472 = vld [vmem:[%s7 + $0xb8] sm:$0xff]
    %v473 = vld [vmem:[%s7 + $0xc0] sm:$0xff]
    %v474 = vld [vmem:[%s7 + $0xc8] sm:$0xff]
    %v475 = vld [vmem:[%s7 + $0xd0] sm:$0xff]
    %v476 = vld [vmem:[%s7 + $0xd8] sm:$0xff]
    %v477 = vld [vmem:[%s7 + $0xe0] sm:$0xff]
    %v478 = vld [vmem:[%s7 + $0xe8] sm:$0xff]
    %v479 = vld [vmem:[%s7 + $0xf0] sm:$0xff]
    %v480 = vld [vmem:[%s7 + $0xf8] sm:$0xff]
    %v481 = vld [vmem:[%s8] sm:$0x1]
    %v483 = vlaneseq
    %v484 = vshrl.u32 %v483, 7
    %v485 = vsub.s32 0, %v484
    %v486 = vrot.slane %v481, %v485
    %488 = vmatprep.subr.mxu0 0.0
    %489 = vmatpush1.msra.mxu0 %v464
    %490 = vmatprep.subr.mxu0 0.0
    %491 = vmatpush1.msra.mxu0 %v463
    %492 = vmatprep.subr.mxu0 0.0
    %493 = vmatpush1.msra.mxu0 %v462
    %494 = vmatprep.subr.mxu0 0.0
    %495 = vmatpush1.msra.mxu0 %v461
    %496 = vmatprep.subr.mxu0 0.0
    %497 = vmatpush1.msra.mxu0 %v460
    %498 = vmatprep.subr.mxu0 0.0
    %499 = vmatpush1.msra.mxu0 %v459
    %500 = vmatprep.subr.mxu0 0.0
    %501 = vmatpush1.msra.mxu0 %v458
    %502 = vmatprep.subr.mxu0 0.0
    %503 = vmatpush1.msra.mxu0 %v457
    %504 = vmatprep.subr.mxu0 0.0
    %505 = vmatpush1.msra.mxu0 %v456
    %506 = vmatprep.subr.mxu0 0.0
    %507 = vmatpush1.msra.mxu0 %v455
    %508 = vmatprep.subr.mxu0 0.0
    %509 = vmatpush1.msra.mxu0 %v454
    %510 = vmatprep.subr.mxu0 0.0
    %511 = vmatpush1.msra.mxu0 %v453
    %512 = vmatprep.subr.mxu0 0.0
    %513 = vmatpush1.msra.mxu0 %v452
    %514 = vmatprep.subr.mxu0 0.0
    %515 = vmatpush1.msra.mxu0 %v451
    %516 = vmatprep.subr.mxu0 0.0
    %517 = vmatpush1.msra.mxu0 %v450
    %518 = vmatprep.subr.mxu0 0.0
    %519 = vmatpush1.msra.mxu0 %v449
    %520 = vmatprep.subr.mxu0 0.0
    %521 = vmatpush2.msra.mxu0 %v480
    %522 = vmatprep.subr.mxu0 0.0
    %523 = vmatpush2.msra.mxu0 %v479
    %524 = vmatprep.subr.mxu0 0.0
    %525 = vmatpush2.msra.mxu0 %v478
    %526 = vmatprep.subr.mxu0 0.0
    %527 = vmatpush2.msra.mxu0 %v477
    %528 = vmatprep.subr.mxu0 0.0
    %529 = vmatpush2.msra.mxu0 %v476
    %530 = vmatprep.subr.mxu0 0.0
    %531 = vmatpush2.msra.mxu0 %v475
    %532 = vmatprep.subr.mxu0 0.0
    %533 = vmatpush2.msra.mxu0 %v474
    %534 = vmatprep.subr.mxu0 0.0
    %535 = vmatpush2.msra.mxu0 %v473
    %536 = vmatprep.subr.mxu0 0.0
    %537 = vmatpush2.msra.mxu0 %v472
    %538 = vmatprep.subr.mxu0 0.0
    %539 = vmatpush2.msra.mxu0 %v471
    %540 = vmatprep.subr.mxu0 0.0
    %541 = vmatpush2.msra.mxu0 %v470
    %542 = vmatprep.subr.mxu0 0.0
    %543 = vmatpush2.msra.mxu0 %v469
    %544 = vmatprep.subr.mxu0 0.0
    %545 = vmatpush2.msra.mxu0 %v468
    %546 = vmatprep.subr.mxu0 0.0
    %547 = vmatpush2.msra.mxu0 %v467
    %548 = vmatprep.subr.mxu0 0.0
    %549 = vmatpush2.msra.mxu0 %v466
    %550 = vmatprep.subr.mxu0 0.0
    %551 = vmatpush2.msra.mxu0 %v465
    %552 = vmatprep.mubr.f32.mxu0 %v448
    %553 = vmatmul.mubr.f32.gmra.mxu0 %v447
    %v554 = vpop.f32.mrf.mxu0
    %v555 = vadd.f32 %v486, %v554
    %v556 = vpop.f32.mrf.mxu0
    %557 = vdwg.mxu0
    %v558 = vtanh.pop %v555
    %559 = vst [vmem:[#allocation2] sm:$0xff] %v558
    // Predicated region
    $region38: #{cont_policy_net_forward.1} parent=1 // pred_check
      _
    $region39: #{cont_policy_net_forward.1} parent=1 // pred_check_branch
      %561 = sbr.rel (0) target = $region41
    $region40: #{cont_policy_net_forward.1} parent=1 // pred_region
      %s563 = ssub.s32 128, 128
      %564 = vsyncadd [#allocation3], %s563
      %s566 = sshll.u32 [#allocation2], 4
      %s567 = int_to_ptr.vmem [resolvable:$true] %s566
      %569 = dma.vmem_to_hbm [thread:$0]  %s567, 128, %s9, [#allocation3]
    $region41: #{cont_policy_net_forward.1} parent=1 // pred_fallthru
      _
    // Predicated region
    $region42: #{cont_policy_net_forward.1} parent=1 // pred_check
      _
    $region43: #{cont_policy_net_forward.1} parent=1 // pred_check_branch
      %571 = sbr.rel (0) target = $region45
    $region44: #{cont_policy_net_forward.1} parent=1 // pred_region
      %572 = dma.done [#allocation3], 128
    $region45: #{cont_policy_net_forward.1} parent=1 // pred_fallthru
      _
    %573 = vsyncpa [#allocation3], 1

</llo_original>
